<compile_context>
chip_gen: v7x
topology: tpu7x:2x2x1
jax: 0.10.0
libtpu: 0.0.40
codegen_flags: <defaults>
</compile_context>

<pallas_src>
import functools

import jax
import jax.numpy as jnp
from jax.experimental import pallas as pl
from jax.experimental.pallas import tpu as pltpu


def _round_up(x, m):
    return ((x + m - 1) // m) * m


def _vmem_config():
    """Generation-aware (vmem_limit_bytes, target_block_bytes)."""
    try:
        cap = int(pltpu.get_tpu_info().vmem_capacity_bytes)
    except Exception:  # query unavailable -> settings valid on every generation
        cap = None
    if cap is None:
        return 48 << 20, 2 << 20
    if cap <= (64 << 20):
        # v7x: 64 MiB physical VMEM / 3.2 TB/s HBM -> leave compiler headroom
        # but target bigger blocks so the fixed ~0.35us step overhead is <10%.
        return 48 << 20, 4 << 20
    # v5e / v6e: 128 MiB physical; the default scoped limit (16/32 MiB) must
    # be raised or large full-N-resident blocks get squeezed.
    return 100 << 20, 2 << 20


def _pick_tile_f(F, rows, *, budget_bytes, target_block_bytes,
                 min_block_bytes=1 << 20):
    """Lane tile (multiple of 128, or F itself) for blocks that keep `rows`
    rows resident. Returns None if even a 128-lane block exceeds the budget."""
    f_lanes = _round_up(F, 128)
    # Double-buffered x input + output blocks, plus the 2-row param strip.
    bytes_per_lane = 2 * 2 * rows * 4 + 2 * 2 * 4
    max_lanes = (budget_bytes // bytes_per_lane) // 128 * 128
    if max_lanes < 128:
        return None
    # Bytes-based target for the x block (amortizes per-step grid overhead).
    tgt_lanes = max(128, (target_block_bytes // (rows * 4)) // 128 * 128)
    tile = min(max_lanes, tgt_lanes, f_lanes)
    # Prefer 4-16 grid steps so the pipeline has work to overlap, but never
    # shrink blocks below ~1 MiB of x.
    if -(-f_lanes // tile) < 4:
        min_lanes = max(128, (min_block_bytes // (rows * 4)) // 128 * 128)
        want = max(min_lanes, _round_up(-(-f_lanes // 4), 128))
        if want < tile:
            tile = want
    # Mild preference for an even step count (v7x shards the parallel lane
    # axis across its two TensorCores).
    steps = -(-f_lanes // tile)
    if steps > 1 and steps % 2 == 1:
        tile2 = _round_up(-(-f_lanes // (steps + 1)), 128)
        if tile2 >= 128 and (-(-f_lanes // tile2)) % 2 == 0:
            tile = tile2
    if tile >= f_lanes:
        return F  # single full-width block; F itself is a legal block dim
    return tile


def _pick_apply_tiles(N, F, *, budget_bytes, target_block_bytes):
    """(tile_n, tile_f) for the N x F apply pass (N not kept fully resident)."""
    f_lanes = _round_up(F, 128)
    # Lane dim as wide as possible (lane-dense stores), capped so an 8-row
    # block already reaches the byte target.
    tile_f = min(f_lanes, max(128, (target_block_bytes // (8 * 4)) // 128 * 128))
    tile_n = max(8, (target_block_bytes // (tile_f * 4)) // 8 * 8)
    if tile_n >= N:
        tile_n = N  # full batch dim is a legal block dim

    def vmem(tn, tf):  # double-buffered in + out blocks + (2, tf) affine strip
        return 2 * 2 * tn * tf * 4 + 2 * 2 * tf * 4

    while tile_n > 8 and tile_n != N and vmem(tile_n, tile_f) > budget_bytes:
        tile_n = max(8, (tile_n // 2) // 8 * 8)
    while tile_f > 128 and vmem(tile_n, tile_f) > budget_bytes:
        tile_f = max(128, (tile_f // 2) // 128 * 128)
    if tile_f >= f_lanes:
        tile_f = F
    return tile_n, tile_f


def _vbn_fused_kernel(x_ref, ss_ref, o_ref, *, vbs, eps):
    """Single pass: full batch resident per block; stats + apply fused."""
    x = x_ref[...]                                        # (N, tile_f) f32
    vb = x[:vbs, :]                                       # static slice
    mean = jnp.mean(vb, axis=0, keepdims=True)            # (1, tile_f)
    diff = vb - mean
    # Unbiased variance (torch.std default ddof=1).
    # TODO(synk): vbs == 1 yields NaN here, matching torch.std(ddof=1).
    var = jnp.sum(diff * diff, axis=0, keepdims=True) / (vbs - 1.0)
    inv = 1.0 / (jnp.sqrt(var) + eps)
    # Fold normalize + scale + shift into a per-column affine computed once on
    # the (1, tile_f) row; per-element work below is a single fused mul+add.
    a = ss_ref[0:1, :] * inv
    b = ss_ref[1:2, :] - mean * a
    o_ref[...] = (x * a + b).astype(o_ref.dtype)


def _vbn_stats_kernel(x_ref, ss_ref, ab_ref, *, vbs, eps):
    """Stats pass: first `vbs` rows -> per-column affine (a, b) slab."""
    vb = x_ref[...][:vbs, :]
    mean = jnp.mean(vb, axis=0, keepdims=True)
    diff = vb - mean
    var = jnp.sum(diff * diff, axis=0, keepdims=True) / (vbs - 1.0)
    inv = 1.0 / (jnp.sqrt(var) + eps)
    a = ss_ref[0:1, :] * inv
    ab_ref[0:1, :] = a
    ab_ref[1:2, :] = ss_ref[1:2, :] - mean * a


def _vbn_apply_kernel(x_ref, ab_ref, o_ref):
    """Apply pass: out = x * a + b, tiled over both N and F."""
    o_ref[...] = (x_ref[...] * ab_ref[0:1, :] + ab_ref[1:2, :]).astype(o_ref.dtype)


def virt_batch_norm_2d(x, scalers, shifters, *, virtual_batch_size, eps=1e-7,
                       two_pass=None):
    """x: (N, C, H, W); scalers/shifters: (1, C). Returns (N, C, H, W).

    two_pass: None -> auto (fused single pass when full-N-resident blocks fit
    VMEM and stay near the byte target; otherwise stats + apply passes).
    True/False forces the corresponding path.
    """
    N, C, H, W = x.shape
    F = C * H * W
    vbs = int(virtual_batch_size)

    # Flatten to (N, F) with F as the lane (fast) dim; free reshape, no pad.
    xf = x.reshape(N, F).astype(jnp.float32)
    # Pack per-channel scale/shift (broadcast over H*W) into one (2, F) slab
    # so each grid step issues a single small parameter DMA.
    scale_b = jnp.repeat(scalers.astype(jnp.float32).reshape(C), H * W)
    shift_b = jnp.repeat(shifters.astype(jnp.float32).reshape(C), H * W)
    ss = jnp.stack([scale_b, shift_b], axis=0)            # (2, F)

    vmem_limit, target_block = _vmem_config()
    budget = int(0.8 * vmem_limit)

    tile_f = _pick_tile_f(F, N, budget_bytes=budget,
                          target_block_bytes=target_block)
    if two_pass is None:
        two_pass = not (tile_f is not None and
                        (tile_f == F or 2 * N * tile_f * 4 >= target_block))

    if not two_pass:
        out = pl.pallas_call(
            functools.partial(_vbn_fused_kernel, vbs=vbs, eps=eps),
            out_shape=jax.ShapeDtypeStruct((N, F), jnp.float32),
            grid_spec=pltpu.PrefetchScalarGridSpec(
                num_scalar_prefetch=0,
                grid=(pl.cdiv(F, tile_f),),
                in_specs=[
                    pl.BlockSpec((N, tile_f), lambda j: (0, j)),
                    pl.BlockSpec((2, tile_f), lambda j: (0, j)),
                ],
                out_specs=pl.BlockSpec((N, tile_f), lambda j: (0, j)),
            ),
            compiler_params=pltpu.CompilerParams(
                dimension_semantics=("parallel",),
                vmem_limit_bytes=vmem_limit,
            ),
        )(xf, ss)
        return out.reshape(N, C, H, W).astype(x.dtype)

    # ---- two-pass path: stats over the first V rows, then tiled apply ----
    # The stats block keeps round_up(V, 8) rows (or all N if N is smaller) so
    # the first V rows are read without materializing an HBM slice copy.
    rows_stats = min(_round_up(vbs, 8), N)
    tile_s = _pick_tile_f(F, rows_stats, budget_bytes=budget,
                          target_block_bytes=target_block)
    if tile_s is None:
        raise ValueError("virtual_batch_size too large: a 128-lane stats "
                         "block does not fit the VMEM budget")

    ab = pl.pallas_call(
        functools.partial(_vbn_stats_kernel, vbs=vbs, eps=eps),
        out_shape=jax.ShapeDtypeStruct((2, F), jnp.float32),
        grid_spec=pltpu.PrefetchScalarGridSpec(
            num_scalar_prefetch=0,
            grid=(pl.cdiv(F, tile_s),),
            in_specs=[
                pl.BlockSpec((rows_stats, tile_s), lambda j: (0, j)),
                pl.BlockSpec((2, tile_s), lambda j: (0, j)),
            ],
            out_specs=pl.BlockSpec((2, tile_s), lambda j: (0, j)),
        ),
        compiler_params=pltpu.CompilerParams(
            dimension_semantics=("parallel",),
            vmem_limit_bytes=vmem_limit,
        ),
    )(xf, ss)

    tile_n, tile_fa = _pick_apply_tiles(N, F, budget_bytes=budget,
                                        target_block_bytes=target_block)
    out = pl.pallas_call(
        _vbn_apply_kernel,
        out_shape=jax.ShapeDtypeStruct((N, F), jnp.float32),
        grid_spec=pltpu.PrefetchScalarGridSpec(
            num_scalar_prefetch=0,
            grid=(pl.cdiv(N, tile_n), pl.cdiv(F, tile_fa)),
            in_specs=[
                pl.BlockSpec((tile_n, tile_fa), lambda i, j: (i, j)),
                pl.BlockSpec((2, tile_fa), lambda i, j: (0, j)),
            ],
            out_specs=pl.BlockSpec((tile_n, tile_fa), lambda i, j: (i, j)),
        ),
        compiler_params=pltpu.CompilerParams(
            dimension_semantics=("parallel", "parallel"),
            vmem_limit_bytes=vmem_limit,
        ),
    )(xf, ab)
    return out.reshape(N, C, H, W).astype(x.dtype)


def _reference(x, scalers, shifters, virtual_batch_size, eps=1e-7):
    vb = x[:virtual_batch_size]
    mean = jnp.mean(vb, axis=0)
    std = jnp.std(vb, axis=0, ddof=1)                 # torch.std default: unbiased
    xn = (x - mean) / (std + eps)
    xn = jnp.transpose(xn, (0, 2, 3, 1)) * scalers.reshape(-1) + shifters.reshape(-1)
    return jnp.transpose(xn, (0, 3, 1, 2))


if __name__ == "__main__":
    # Small shapes consistent with the module: virtual batch V=4, real batch
    # B=2, C=4 channels, 16x16 spatial -> x: (6, 4, 16, 16)
    V, B, C, H, W = 4, 2, 4, 16, 16
    eps = 1e-7

    key = jax.random.PRNGKey(0)
    kx, ks, kb = jax.random.split(key, 3)
    x = jax.random.normal(kx, (V + B, C, H, W), dtype=jnp.float32)
    scalers = jnp.ones((1, C), jnp.float32) + 0.1 * jax.random.normal(ks, (1, C))
    shifters = 0.1 * jax.random.normal(kb, (1, C))

    ref = _reference(x, scalers, shifters, V, eps)

    # Auto path (small N -> fused single pass).
    out = virt_batch_norm_2d(x, scalers, shifters, virtual_batch_size=V, eps=eps)
    out = jax.block_until_ready(out)
    assert out.shape == (V + B, C, H, W)
    assert jnp.allclose(out, ref, atol=1e-5, rtol=1e-5), "fused path mismatch"

    # Forced two-pass path (stats kernel + apply kernel) at the same shapes,
    # so both code paths are exercised and validated.
    out2 = virt_batch_norm_2d(x, scalers, shifters, virtual_batch_size=V,
                              eps=eps, two_pass=True)
    out2 = jax.block_until_ready(out2)
    assert jnp.allclose(out2, ref, atol=1e-5, rtol=1e-5), "two-pass mismatch"

    print("KERNEL_OK")
</pallas_src>

<mosaic_0001>
module attributes {stable_mosaic.version = 11 : i64} {
  func.func @_vbn_fused_kernel(%arg0: i32, %arg1: memref<6x1024xf32, #tpu.memory_space<vmem>>, %arg2: memref<2x1024xf32, #tpu.memory_space<vmem>>, %arg3: memref<6x1024xf32, #tpu.memory_space<vmem>>) attributes {dimension_semantics = [#tpu.dimension_semantics<parallel>], iteration_bounds = array<i64: 1>, scalar_prefetch = 0 : i64, scratch_operands = 0 : i64, tpu.core_type = #tpu.core_type<tc>, window_params = [{transform_indices = @transform_0, window_bounds = array<i64: 6, 1024>}, {transform_indices = @transform_1, window_bounds = array<i64: 2, 1024>}, {transform_indices = @transform_2, window_bounds = array<i64: 6, 1024>}]} {
    %c0 = arith.constant 0 : index
    %c0_0 = arith.constant 0 : index
    %0 = vector.load %arg1[%c0, %c0_0] : memref<6x1024xf32, #tpu.memory_space<vmem>>, vector<6x1024xf32>
    %1 = vector.extract_strided_slice %0 {offsets = [0, 0], sizes = [4, 1024], strides = [1, 1]} : vector<6x1024xf32> to vector<4x1024xf32>
    %cst = arith.constant dense<0.000000e+00> : vector<1024xf32>
    %2 = vector.multi_reduction <add>, %1, %cst [0] : vector<4x1024xf32> to vector<1024xf32>
    %3 = vector.shape_cast %2 : vector<1024xf32> to vector<1x1024xf32>
    %cst_1 = arith.constant 4.000000e+00 : f32
    %4 = vector.broadcast %cst_1 : f32 to vector<1x1024xf32>
    %5 = arith.divf %3, %4 : vector<1x1024xf32>
    %6 = vector.broadcast %5 : vector<1x1024xf32> to vector<4x1024xf32>
    %7 = arith.subf %1, %6 : vector<4x1024xf32>
    %8 = arith.mulf %7, %7 : vector<4x1024xf32>
    %cst_2 = arith.constant dense<0.000000e+00> : vector<1024xf32>
    %9 = vector.multi_reduction <add>, %8, %cst_2 [0] : vector<4x1024xf32> to vector<1024xf32>
    %10 = vector.shape_cast %9 : vector<1024xf32> to vector<1x1024xf32>
    %cst_3 = arith.constant 3.000000e+00 : f32
    %11 = vector.broadcast %cst_3 : f32 to vector<1x1024xf32>
    %12 = arith.divf %10, %11 : vector<1x1024xf32>
    %13 = math.sqrt %12 : vector<1x1024xf32>
    %cst_4 = arith.constant 1.000000e-07 : f32
    %14 = vector.broadcast %cst_4 : f32 to vector<1x1024xf32>
    %15 = arith.addf %13, %14 : vector<1x1024xf32>
    %cst_5 = arith.constant 1.000000e+00 : f32
    %16 = vector.broadcast %cst_5 : f32 to vector<1x1024xf32>
    %17 = arith.divf %16, %15 : vector<1x1024xf32>
    %c0_6 = arith.constant 0 : index
    %c0_7 = arith.constant 0 : index
    %18 = vector.load %arg2[%c0_6, %c0_7] : memref<2x1024xf32, #tpu.memory_space<vmem>>, vector<1x1024xf32>
    %19 = arith.mulf %18, %17 : vector<1x1024xf32>
    %c1 = arith.constant 1 : index
    %c0_8 = arith.constant 0 : index
    %20 = vector.load %arg2[%c1, %c0_8] : memref<2x1024xf32, #tpu.memory_space<vmem>>, vector<1x1024xf32>
    %21 = arith.mulf %5, %19 : vector<1x1024xf32>
    %22 = arith.subf %20, %21 : vector<1x1024xf32>
    %23 = vector.broadcast %19 : vector<1x1024xf32> to vector<6x1024xf32>
    %24 = arith.mulf %0, %23 : vector<6x1024xf32>
    %25 = vector.broadcast %22 : vector<1x1024xf32> to vector<6x1024xf32>
    %26 = arith.addf %24, %25 : vector<6x1024xf32>
    %c0_9 = arith.constant 0 : index
    %c0_10 = arith.constant 0 : index
    %27 = vector.load %arg3[%c0_9, %c0_10] : memref<6x1024xf32, #tpu.memory_space<vmem>>, vector<6x1024xf32>
    tpu.vector_store %arg3[%c0_9, %c0_10], %26 {strides = array<i32>} : memref<6x1024xf32, #tpu.memory_space<vmem>>, vector<6x1024xf32>,
    return
  }
  func.func @transform_0(%arg0: i32) -> (i32, i32) {
    %c0_i32 = arith.constant 0 : i32
    %c0_i32_0 = arith.constant 0 : i32
    return %c0_i32, %arg0 : i32, i32
  }
  func.func @transform_1(%arg0: i32) -> (i32, i32) {
    %c0_i32 = arith.constant 0 : i32
    %c0_i32_0 = arith.constant 0 : i32
    return %c0_i32, %arg0 : i32, i32
  }
  func.func @transform_2(%arg0: i32) -> (i32, i32) {
    %c0_i32 = arith.constant 0 : i32
    %c0_i32_0 = arith.constant 0 : i32
    return %c0_i32, %arg0 : i32, i32
  }
}

</mosaic_0001>

<llo_original>
// kernel: tpu_custom_call.1
$region0: #{tpu_custom_call.1}
  #allocation0 [shape = 'u32[]', space=smem, size = 0x4, offset = 0x4, fixed_abs, tag = 'smem constant byte address 0x4 - core index']
  #allocation1 [shape = 'u32[144,128]{1,0:T(1,128)}', space=vmem, size = 0x12000, scoped, tag = 'internal scratch']
  %s0 = inlined_call_operand.hbm [shape: f32[6,1024], index: 0, kind: input, shape index: {}]
  %s1 = inlined_call_operand.hbm [shape: f32[2,1024], index: 1, kind: input, shape index: {}]
  %s2 = inlined_call_operand.hbm [shape: f32[6,1024], index: 2, kind: output, shape index: {}]
  %s3 = sld [smem:[#allocation0]]
  $region26: #{tpu_custom_call.1} parent=0
    _
  %s5 = ssub.s32 1, %s3
  %s6 = scalar_select 0, %s5, %s3
  $region1: #{tpu_custom_call.1} parent=0
    #allocation2 [shape = 'u8[32768]{0}', space=vmem, size = 0x8000, scoped, tag = 'input window, operand 0, single buffered']
    #allocation3 [shape = 's32[1]{0}', space=sflag, size = 0x4, scoped, tag = 'scoped memory for tpu_custom_call.1']
    #allocation4 [shape = 's32[1]{0}', space=sflag, size = 0x4, scoped, tag = 'scoped memory for tpu_custom_call.1']
    #allocation5 [shape = 'u8[8192]{0}', space=vmem, size = 0x2000, scoped, tag = 'input window, operand 1, single buffered']
    #allocation6 [shape = 's32[1]{0}', space=sflag, size = 0x4, scoped, tag = 'scoped memory for tpu_custom_call.1']
    #allocation7 [shape = 'u8[32768]{0}', space=vmem, size = 0x8000, scoped, tag = 'output window, operand 0, single buffered']
    %7 = vsyncpa [#allocation3], 0
    %8 = vsyncpa [#allocation6], 0
    %9 = vsyncpa [#allocation4], 0
    // Predicated region
    $region2: #{tpu_custom_call.1} parent=1 // pred_check
      _
    $region3: #{tpu_custom_call.1} parent=1 // pred_check_branch
      %11 = sbr.rel (0) target = $region5
    $region4: #{tpu_custom_call.1} parent=1 // pred_region
      %s13 = ssub.s32 1024, 1024
      %14 = vsyncadd [#allocation3], %s13
      %s16 = sshll.u32 [#allocation2], 4
      %s17 = int_to_ptr.vmem [resolvable:$true] %s16
      %19 = dma.hbm_to_vmem [thread:$0]  %s0, 1024, %s17, [#allocation3]
    $region5: #{tpu_custom_call.1} parent=1 // pred_fallthru
      _
    // Predicated region
    $region6: #{tpu_custom_call.1} parent=1 // pred_check
      _
    $region7: #{tpu_custom_call.1} parent=1 // pred_check_branch
      %21 = sbr.rel (0) target = $region9
    $region8: #{tpu_custom_call.1} parent=1 // pred_region
      %s23 = ssub.s32 256, 256
      %24 = vsyncadd [#allocation6], %s23
      %s26 = sshll.u32 [#allocation5], 4
      %s27 = int_to_ptr.vmem [resolvable:$true] %s26
      %29 = dma.hbm_to_vmem [thread:$0]  %s1, 256, %s27, [#allocation6]
    $region9: #{tpu_custom_call.1} parent=1 // pred_fallthru
      _
    // Predicated region
    $region10: #{tpu_custom_call.1} parent=1 // pred_check
      _
    $region11: #{tpu_custom_call.1} parent=1 // pred_check_branch
      %31 = sbr.rel (0) target = $region13
    $region12: #{tpu_custom_call.1} parent=1 // pred_region
      %32 = dma.done [#allocation3], 1024
    $region13: #{tpu_custom_call.1} parent=1 // pred_fallthru
      _
    // Predicated region
    $region14: #{tpu_custom_call.1} parent=1 // pred_check
      _
    $region15: #{tpu_custom_call.1} parent=1 // pred_check_branch
      %34 = sbr.rel (0) target = $region17
    $region16: #{tpu_custom_call.1} parent=1 // pred_region
      %35 = dma.done [#allocation6], 256
    $region17: #{tpu_custom_call.1} parent=1 // pred_fallthru
      _
    %v36 = vld [vmem:[#allocation2] sm:$0x3f]
    %v37 = vld [vmem:[#allocation2 + $0x8] sm:$0x3f]
    %v38 = vld [vmem:[#allocation2 + $0x10] sm:$0x3f]
    %v39 = vld [vmem:[#allocation2 + $0x18] sm:$0x3f]
    %v40 = vld [vmem:[#allocation2 + $0x20] sm:$0x3f]
    %v41 = vld [vmem:[#allocation2 + $0x28] sm:$0x3f]
    %v42 = vld [vmem:[#allocation2 + $0x30] sm:$0x3f]
    %v43 = vld [vmem:[#allocation2 + $0x38] sm:$0x3f]
    %vm44 = vcmask 1043456
    %v45 = vsel %vm44, %v36, 0.0
    %v46 = vrot.slane %v45, 4
    %v47 = vadd.f32 %v45, %v46
    %v48 = vrot.slane %v47, 2
    %v49 = vadd.f32 %v47, %v48
    %v50 = vrot.slane %v49, 1
    %v51 = vadd.f32 %v49, %v50
    %v52 = vsel %vm44, %v37, 0.0
    %v53 = vrot.slane %v52, 4
    %v54 = vadd.f32 %v52, %v53
    %v55 = vrot.slane %v54, 2
    %v56 = vadd.f32 %v54, %v55
    %v57 = vrot.slane %v56, 1
    %v58 = vadd.f32 %v56, %v57
    %v59 = vsel %vm44, %v38, 0.0
    %v60 = vrot.slane %v59, 4
    %v61 = vadd.f32 %v59, %v60
    %v62 = vrot.slane %v61, 2
    %v63 = vadd.f32 %v61, %v62
    %v64 = vrot.slane %v63, 1
    %v65 = vadd.f32 %v63, %v64
    %v66 = vsel %vm44, %v39, 0.0
    %v67 = vrot.slane %v66, 4
    %v68 = vadd.f32 %v66, %v67
    %v69 = vrot.slane %v68, 2
    %v70 = vadd.f32 %v68, %v69
    %v71 = vrot.slane %v70, 1
    %v72 = vadd.f32 %v70, %v71
    %v73 = vsel %vm44, %v40, 0.0
    %v74 = vrot.slane %v73, 4
    %v75 = vadd.f32 %v73, %v74
    %v76 = vrot.slane %v75, 2
    %v77 = vadd.f32 %v75, %v76
    %v78 = vrot.slane %v77, 1
    %v79 = vadd.f32 %v77, %v78
    %v80 = vsel %vm44, %v41, 0.0
    %v81 = vrot.slane %v80, 4
    %v82 = vadd.f32 %v80, %v81
    %v83 = vrot.slane %v82, 2
    %v84 = vadd.f32 %v82, %v83
    %v85 = vrot.slane %v84, 1
    %v86 = vadd.f32 %v84, %v85
    %v87 = vsel %vm44, %v42, 0.0
    %v88 = vrot.slane %v87, 4
    %v89 = vadd.f32 %v87, %v88
    %v90 = vrot.slane %v89, 2
    %v91 = vadd.f32 %v89, %v90
    %v92 = vrot.slane %v91, 1
    %v93 = vadd.f32 %v91, %v92
    %v94 = vsel %vm44, %v43, 0.0
    %v95 = vrot.slane %v94, 4
    %v96 = vadd.f32 %v94, %v95
    %v97 = vrot.slane %v96, 2
    %v98 = vadd.f32 %v96, %v97
    %v99 = vrot.slane %v98, 1
    %v100 = vadd.f32 %v98, %v99
    %v101 = vrcp.pop 4.0
    %v102 = vmul.f32 %v51, %v101
    %v103 = vmul.f32 %v58, %v101
    %v104 = vmul.f32 %v65, %v101
    %v105 = vmul.f32 %v72, %v101
    %v106 = vmul.f32 %v79, %v101
    %v107 = vmul.f32 %v86, %v101
    %v108 = vmul.f32 %v93, %v101
    %v109 = vmul.f32 %v100, %v101
    %v110 = vsub.f32 %v36, %v102
    %v111 = vsub.f32 %v37, %v103
    %v112 = vsub.f32 %v38, %v104
    %v113 = vsub.f32 %v39, %v105
    %v114 = vsub.f32 %v40, %v106
    %v115 = vsub.f32 %v41, %v107
    %v116 = vsub.f32 %v42, %v108
    %v117 = vsub.f32 %v43, %v109
    %v118 = vmul.f32 %v110, %v110
    %v119 = vmul.f32 %v111, %v111
    %v120 = vmul.f32 %v112, %v112
    %v121 = vmul.f32 %v113, %v113
    %v122 = vmul.f32 %v114, %v114
    %v123 = vmul.f32 %v115, %v115
    %v124 = vmul.f32 %v116, %v116
    %v125 = vmul.f32 %v117, %v117
    %v126 = vsel %vm44, %v118, 0.0
    %v127 = vrot.slane %v126, 4
    %v128 = vadd.f32 %v126, %v127
    %v129 = vrot.slane %v128, 2
    %v130 = vadd.f32 %v128, %v129
    %v131 = vrot.slane %v130, 1
    %v132 = vadd.f32 %v130, %v131
    %v133 = vsel %vm44, %v119, 0.0
    %v134 = vrot.slane %v133, 4
    %v135 = vadd.f32 %v133, %v134
    %v136 = vrot.slane %v135, 2
    %v137 = vadd.f32 %v135, %v136
    %v138 = vrot.slane %v137, 1
    %v139 = vadd.f32 %v137, %v138
    %v140 = vsel %vm44, %v120, 0.0
    %v141 = vrot.slane %v140, 4
    %v142 = vadd.f32 %v140, %v141
    %v143 = vrot.slane %v142, 2
    %v144 = vadd.f32 %v142, %v143
    %v145 = vrot.slane %v144, 1
    %v146 = vadd.f32 %v144, %v145
    %v147 = vsel %vm44, %v121, 0.0
    %v148 = vrot.slane %v147, 4
    %v149 = vadd.f32 %v147, %v148
    %v150 = vrot.slane %v149, 2
    %v151 = vadd.f32 %v149, %v150
    %v152 = vrot.slane %v151, 1
    %v153 = vadd.f32 %v151, %v152
    %v154 = vsel %vm44, %v122, 0.0
    %v155 = vrot.slane %v154, 4
    %v156 = vadd.f32 %v154, %v155
    %v157 = vrot.slane %v156, 2
    %v158 = vadd.f32 %v156, %v157
    %v159 = vrot.slane %v158, 1
    %v160 = vadd.f32 %v158, %v159
    %v161 = vsel %vm44, %v123, 0.0
    %v162 = vrot.slane %v161, 4
    %v163 = vadd.f32 %v161, %v162
    %v164 = vrot.slane %v163, 2
    %v165 = vadd.f32 %v163, %v164
    %v166 = vrot.slane %v165, 1
    %v167 = vadd.f32 %v165, %v166
    %v168 = vsel %vm44, %v124, 0.0
    %v169 = vrot.slane %v168, 4
    %v170 = vadd.f32 %v168, %v169
    %v171 = vrot.slane %v170, 2
    %v172 = vadd.f32 %v170, %v171
    %v173 = vrot.slane %v172, 1
    %v174 = vadd.f32 %v172, %v173
    %v175 = vsel %vm44, %v125, 0.0
    %v176 = vrot.slane %v175, 4
    %v177 = vadd.f32 %v175, %v176
    %v178 = vrot.slane %v177, 2
    %v179 = vadd.f32 %v177, %v178
    %v180 = vrot.slane %v179, 1
    %v181 = vadd.f32 %v179, %v180
    %v182 = vrcp.pop 3.0
    %v183 = vmul.f32 %v132, %v182
    %v184 = vmul.f32 %v139, %v182
    %v185 = vmul.f32 %v146, %v182
    %v186 = vmul.f32 %v153, %v182
    %v187 = vmul.f32 %v160, %v182
    %v188 = vmul.f32 %v167, %v182
    %v189 = vmul.f32 %v174, %v182
    %v190 = vmul.f32 %v181, %v182
    %v191 = vrsqrt.pop %v183
    %v192 = vmul.f32 %v183, %v191
    %vm193 = vcmp.eq.f32.partialorder %v183, inf
    %v194 = vsel %vm193, %v183, %v192
    %vm195 = vcmp.eq.f32.partialorder %v183, 0.0
    %v196 = vand.u32 %v183, 2147483648
    %v197 = vsel %vm195, %v196, %v194
    %v198 = vrsqrt.pop %v184
    %v199 = vmul.f32 %v184, %v198
    %vm200 = vcmp.eq.f32.partialorder %v184, inf
    %v201 = vsel %vm200, %v184, %v199
    %vm202 = vcmp.eq.f32.partialorder %v184, 0.0
    %v203 = vand.u32 %v184, 2147483648
    %v204 = vsel %vm202, %v203, %v201
    %v205 = vrsqrt.pop %v185
    %v206 = vmul.f32 %v185, %v205
    %vm207 = vcmp.eq.f32.partialorder %v185, inf
    %v208 = vsel %vm207, %v185, %v206
    %vm209 = vcmp.eq.f32.partialorder %v185, 0.0
    %v210 = vand.u32 %v185, 2147483648
    %v211 = vsel %vm209, %v210, %v208
    %v212 = vrsqrt.pop %v186
    %v213 = vmul.f32 %v186, %v212
    %vm214 = vcmp.eq.f32.partialorder %v186, inf
    %v215 = vsel %vm214, %v186, %v213
    %vm216 = vcmp.eq.f32.partialorder %v186, 0.0
    %v217 = vand.u32 %v186, 2147483648
    %v218 = vsel %vm216, %v217, %v215
    %v219 = vrsqrt.pop %v187
    %v220 = vmul.f32 %v187, %v219
    %vm221 = vcmp.eq.f32.partialorder %v187, inf
    %v222 = vsel %vm221, %v187, %v220
    %vm223 = vcmp.eq.f32.partialorder %v187, 0.0
    %v224 = vand.u32 %v187, 2147483648
    %v225 = vsel %vm223, %v224, %v222
    %v226 = vrsqrt.pop %v188
    %v227 = vmul.f32 %v188, %v226
    %vm228 = vcmp.eq.f32.partialorder %v188, inf
    %v229 = vsel %vm228, %v188, %v227
    %vm230 = vcmp.eq.f32.partialorder %v188, 0.0
    %v231 = vand.u32 %v188, 2147483648
    %v232 = vsel %vm230, %v231, %v229
    %v233 = vrsqrt.pop %v189
    %v234 = vmul.f32 %v189, %v233
    %vm235 = vcmp.eq.f32.partialorder %v189, inf
    %v236 = vsel %vm235, %v189, %v234
    %vm237 = vcmp.eq.f32.partialorder %v189, 0.0
    %v238 = vand.u32 %v189, 2147483648
    %v239 = vsel %vm237, %v238, %v236
    %v240 = vrsqrt.pop %v190
    %v241 = vmul.f32 %v190, %v240
    %vm242 = vcmp.eq.f32.partialorder %v190, inf
    %v243 = vsel %vm242, %v190, %v241
    %vm244 = vcmp.eq.f32.partialorder %v190, 0.0
    %v245 = vand.u32 %v190, 2147483648
    %v246 = vsel %vm244, %v245, %v243
    %v247 = vadd.f32 %v197, 1e-07
    %v248 = vadd.f32 %v204, 1e-07
    %v249 = vadd.f32 %v211, 1e-07
    %v250 = vadd.f32 %v218, 1e-07
    %v251 = vadd.f32 %v225, 1e-07
    %v252 = vadd.f32 %v232, 1e-07
    %v253 = vadd.f32 %v239, 1e-07
    %v254 = vadd.f32 %v246, 1e-07
    %v255 = vrcp.pop %v247
    %v256 = vmul.f32 1.0, %v255
    %v257 = vrcp.pop %v248
    %v258 = vmul.f32 1.0, %v257
    %v259 = vrcp.pop %v249
    %v260 = vmul.f32 1.0, %v259
    %v261 = vrcp.pop %v250
    %v262 = vmul.f32 1.0, %v261
    %v263 = vrcp.pop %v251
    %v264 = vmul.f32 1.0, %v263
    %v265 = vrcp.pop %v252
    %v266 = vmul.f32 1.0, %v265
    %v267 = vrcp.pop %v253
    %v268 = vmul.f32 1.0, %v267
    %v269 = vrcp.pop %v254
    %v270 = vmul.f32 1.0, %v269
    %v271 = vld [vmem:[#allocation5] ss:$2 sm:$0xff]
    %v280 = vcombine.low %v256, %v258
    %v281 = vcombine.low %v260, %v262
    %v282 = vcombine.low %v264, %v266
    %v283 = vcombine.low %v268, %v270
    %v285 = vunpack.c.l.s4 1966171168
    %v286 = vunpack.c.0.s8 %v285
    %v287 = vlaneseq
    %v288 = vshrl.u32 %v287, 7
    %v289 = vsub.s32 %v286, %v288
    %v290 = vrot.slane %v280, %v289
    %v292 = vunpack.c.l.s4 1966171168
    %v293 = vunpack.c.0.s8 %v292
    %v294 = vlaneseq
    %v295 = vshrl.u32 %v294, 7
    %v296 = vsub.s32 %v293, %v295
    %v297 = vrot.slane %v281, %v296
    %v299 = vunpack.c.l.s4 1966171168
    %v300 = vunpack.c.0.s8 %v299
    %v301 = vlaneseq
    %v302 = vshrl.u32 %v301, 7
    %v303 = vsub.s32 %v300, %v302
    %v304 = vrot.slane %v282, %v303
    %v306 = vunpack.c.l.s4 1966171168
    %v307 = vunpack.c.0.s8 %v306
    %v308 = vlaneseq
    %v309 = vshrl.u32 %v308, 7
    %v310 = vsub.s32 %v307, %v309
    %v311 = vrot.slane %v283, %v310
    %v312 = vcombine.low %v290, %v297
    %v313 = vcombine.low %v304, %v311
    %v315 = vunpack.c.l.s4 1966171168
    %v316 = vunpack.c.0.s8 %v315
    %v317 = vlaneseq
    %v318 = vshrl.u32 %v317, 7
    %v319 = vsub.s32 %v316, %v318
    %v320 = vrot.slane %v312, %v319
    %v322 = vunpack.c.l.s4 1966171168
    %v323 = vunpack.c.0.s8 %v322
    %v324 = vlaneseq
    %v325 = vshrl.u32 %v324, 7
    %v326 = vsub.s32 %v323, %v325
    %v327 = vrot.slane %v313, %v326
    %v328 = vcombine.low %v320, %v327
    %v330 = vmul.f32 %v271, %v328
    %s331 = scalar_lea.vmem [#allocation5], 1
    %v332 = vld [vmem:[%s331] ss:$2 sm:$0xff]
    %v334 = vlaneseq
    %v335 = vshrl.u32 %v334, 7
    %v336 = vsub.s32 0, %v335
    %v337 = vrot.slane %v330, %v336
    %v338 = vlaneseq
    %v339 = vshrl.u32 %v338, 7
    %v340 = vsub.s32 1, %v339
    %v341 = vrot.slane %v330, %v340
    %v342 = vlaneseq
    %v343 = vshrl.u32 %v342, 7
    %v344 = vsub.s32 2, %v343
    %v345 = vrot.slane %v330, %v344
    %v346 = vlaneseq
    %v347 = vshrl.u32 %v346, 7
    %v348 = vsub.s32 3, %v347
    %v349 = vrot.slane %v330, %v348
    %v350 = vlaneseq
    %v351 = vshrl.u32 %v350, 7
    %v352 = vsub.s32 4, %v351
    %v353 = vrot.slane %v330, %v352
    %v354 = vlaneseq
    %v355 = vshrl.u32 %v354, 7
    %v356 = vsub.s32 5, %v355
    %v357 = vrot.slane %v330, %v356
    %v358 = vlaneseq
    %v359 = vshrl.u32 %v358, 7
    %v360 = vsub.s32 6, %v359
    %v361 = vrot.slane %v330, %v360
    %v362 = vlaneseq
    %v363 = vshrl.u32 %v362, 7
    %v364 = vsub.s32 7, %v363
    %v365 = vrot.slane %v330, %v364
    %v374 = vmul.f32 %v102, %v337
    %v375 = vmul.f32 %v103, %v341
    %v376 = vmul.f32 %v104, %v345
    %v377 = vmul.f32 %v105, %v349
    %v378 = vmul.f32 %v106, %v353
    %v379 = vmul.f32 %v107, %v357
    %v380 = vmul.f32 %v108, %v361
    %v381 = vmul.f32 %v109, %v365
    %v390 = vcombine.low %v374, %v375
    %v391 = vcombine.low %v376, %v377
    %v392 = vcombine.low %v378, %v379
    %v393 = vcombine.low %v380, %v381
    %v395 = vunpack.c.l.s4 1966171168
    %v396 = vunpack.c.0.s8 %v395
    %v397 = vlaneseq
    %v398 = vshrl.u32 %v397, 7
    %v399 = vsub.s32 %v396, %v398
    %v400 = vrot.slane %v390, %v399
    %v402 = vunpack.c.l.s4 1966171168
    %v403 = vunpack.c.0.s8 %v402
    %v404 = vlaneseq
    %v405 = vshrl.u32 %v404, 7
    %v406 = vsub.s32 %v403, %v405
    %v407 = vrot.slane %v391, %v406
    %v409 = vunpack.c.l.s4 1966171168
    %v410 = vunpack.c.0.s8 %v409
    %v411 = vlaneseq
    %v412 = vshrl.u32 %v411, 7
    %v413 = vsub.s32 %v410, %v412
    %v414 = vrot.slane %v392, %v413
    %v416 = vunpack.c.l.s4 1966171168
    %v417 = vunpack.c.0.s8 %v416
    %v418 = vlaneseq
    %v419 = vshrl.u32 %v418, 7
    %v420 = vsub.s32 %v417, %v419
    %v421 = vrot.slane %v393, %v420
    %v422 = vcombine.low %v400, %v407
    %v423 = vcombine.low %v414, %v421
    %v425 = vunpack.c.l.s4 1966171168
    %v426 = vunpack.c.0.s8 %v425
    %v427 = vlaneseq
    %v428 = vshrl.u32 %v427, 7
    %v429 = vsub.s32 %v426, %v428
    %v430 = vrot.slane %v422, %v429
    %v432 = vunpack.c.l.s4 1966171168
    %v433 = vunpack.c.0.s8 %v432
    %v434 = vlaneseq
    %v435 = vshrl.u32 %v434, 7
    %v436 = vsub.s32 %v433, %v435
    %v437 = vrot.slane %v423, %v436
    %v438 = vcombine.low %v430, %v437
    %v440 = vsub.f32 %v332, %v438
    %v441 = vmul.f32 %v36, %v337
    %v442 = vmul.f32 %v37, %v341
    %v443 = vmul.f32 %v38, %v345
    %v444 = vmul.f32 %v39, %v349
    %v445 = vmul.f32 %v40, %v353
    %v446 = vmul.f32 %v41, %v357
    %v447 = vmul.f32 %v42, %v361
    %v448 = vmul.f32 %v43, %v365
    %v450 = vlaneseq
    %v451 = vshrl.u32 %v450, 7
    %v452 = vsub.s32 0, %v451
    %v453 = vrot.slane %v440, %v452
    %v454 = vlaneseq
    %v455 = vshrl.u32 %v454, 7
    %v456 = vsub.s32 1, %v455
    %v457 = vrot.slane %v440, %v456
    %v458 = vlaneseq
    %v459 = vshrl.u32 %v458, 7
    %v460 = vsub.s32 2, %v459
    %v461 = vrot.slane %v440, %v460
    %v462 = vlaneseq
    %v463 = vshrl.u32 %v462, 7
    %v464 = vsub.s32 3, %v463
    %v465 = vrot.slane %v440, %v464
    %v466 = vlaneseq
    %v467 = vshrl.u32 %v466, 7
    %v468 = vsub.s32 4, %v467
    %v469 = vrot.slane %v440, %v468
    %v470 = vlaneseq
    %v471 = vshrl.u32 %v470, 7
    %v472 = vsub.s32 5, %v471
    %v473 = vrot.slane %v440, %v472
    %v474 = vlaneseq
    %v475 = vshrl.u32 %v474, 7
    %v476 = vsub.s32 6, %v475
    %v477 = vrot.slane %v440, %v476
    %v478 = vlaneseq
    %v479 = vshrl.u32 %v478, 7
    %v480 = vsub.s32 7, %v479
    %v481 = vrot.slane %v440, %v480
    %v490 = vadd.f32 %v441, %v453
    %v491 = vadd.f32 %v442, %v457
    %v492 = vadd.f32 %v443, %v461
    %v493 = vadd.f32 %v444, %v465
    %v494 = vadd.f32 %v445, %v469
    %v495 = vadd.f32 %v446, %v473
    %v496 = vadd.f32 %v447, %v477
    %v497 = vadd.f32 %v448, %v481
    %498 = vst [vmem:[#allocation7] sm:$0x3f] %v490
    %499 = vst [vmem:[#allocation7 + $0x8] sm:$0x3f] %v491
    %500 = vst [vmem:[#allocation7 + $0x10] sm:$0x3f] %v492
    %501 = vst [vmem:[#allocation7 + $0x18] sm:$0x3f] %v493
    %502 = vst [vmem:[#allocation7 + $0x20] sm:$0x3f] %v494
    %503 = vst [vmem:[#allocation7 + $0x28] sm:$0x3f] %v495
    %504 = vst [vmem:[#allocation7 + $0x30] sm:$0x3f] %v496
    %505 = vst [vmem:[#allocation7 + $0x38] sm:$0x3f] %v497
    // Predicated region
    $region18: #{tpu_custom_call.1} parent=1 // pred_check
      _
    $region19: #{tpu_custom_call.1} parent=1 // pred_check_branch
      %507 = sbr.rel (0) target = $region21
    $region20: #{tpu_custom_call.1} parent=1 // pred_region
      %s509 = ssub.s32 1024, 1024
      %510 = vsyncadd [#allocation4], %s509
      %s512 = sshll.u32 [#allocation7], 4
      %s513 = int_to_ptr.vmem [resolvable:$true] %s512
      %515 = dma.vmem_to_hbm [thread:$0]  %s513, 1024, %s2, [#allocation4]
    $region21: #{tpu_custom_call.1} parent=1 // pred_fallthru
      _
    // Predicated region
    $region22: #{tpu_custom_call.1} parent=1 // pred_check
      _
    $region23: #{tpu_custom_call.1} parent=1 // pred_check_branch
      %517 = sbr.rel (0) target = $region25
    $region24: #{tpu_custom_call.1} parent=1 // pred_region
      %518 = dma.done [#allocation4], 1024
    $region25: #{tpu_custom_call.1} parent=1 // pred_fallthru
      _
    %519 = vsyncpa [#allocation3], 1
    %520 = vsyncpa [#allocation6], 1
    %521 = vsyncpa [#allocation4], 1

</llo_original>
